<compile_context>
chip_gen: v5e
topology: v5e:2x2
jax: 0.10.0
libtpu: 0.0.40
codegen_flags: <defaults>
</compile_context>

<pallas_src>
import math

import jax
import jax.numpy as jnp
from jax.experimental import pallas as pl
from jax.experimental.pallas import tpu as pltpu


_PAD_TIME = -3.0e38  # sentinel survival time for padded samples


def _round_up(x, m):
    return (x + m - 1) // m * m


def _finalize(acc, risk_j, e):
    """acc rows: 0 = numer(hi), 1 = numer(lo residual), 2 = denom (count)."""
    numer = acc[0:1, :] + acc[1:2, :]            # (1, BLK_J) f32
    denom = acc[2:3, :]                          # (1, BLK_J) f32
    log_loss = jnp.log(numer) - jnp.log(denom)   # EUP only; no VPU divide
    return (risk_j - log_loss) * e


def _nll_kernel_single(y_col_ref, y_row_ref, lhs_ref, risk_j_ref, e_ref,
                       contrib_ref):
    """grid = (j_tiles,): whole i range in one pass (no scratch, no pl.when).

    y_col_ref  : (N_pad, 1)  f32  survival times, column layout (full i range)
    y_row_ref  : (1, BLK_J)  f32  survival times of the j tile, lane-dense
    lhs_ref    : (8, N_pad)  bf16 row0 = bf16(exp(risk-m)), row1 = residual, row2 = 1
    risk_j_ref : (1, BLK_J)  f32  shifted risk of the j tile
    e_ref      : (1, BLK_J)  f32  event indicator of the j tile
    contrib_ref: (1, BLK_J)  f32  (risk[j] - log_loss[j]) * e[j]
    """
    # mask[i, j] = 1{ y[j] <= y[i] }  (risk-set indicator, bf16 is exact for 0/1)
    mask = (y_row_ref[...] <= y_col_ref[...]).astype(jnp.bfloat16)      # (N_pad, BLK_J)
    acc = jnp.dot(lhs_ref[...], mask, preferred_element_type=jnp.float32)  # (8, BLK_J)
    contrib_ref[...] = _finalize(acc, risk_j_ref[...], e_ref[...])


def _nll_kernel_tiled(y_col_ref, y_row_ref, lhs_ref, risk_j_ref, e_ref,
                      contrib_ref, acc_ref):
    """grid = (j_tiles, i_tiles): i (reduction) axis last, accumulated in VMEM."""
    i = pl.program_id(1)

    @pl.when(i == 0)
    def _():
        acc_ref[...] = jnp.zeros_like(acc_ref)

    mask = (y_row_ref[...] <= y_col_ref[...]).astype(jnp.bfloat16)      # (BLK_I, BLK_J)
    acc_ref[...] += jnp.dot(lhs_ref[...], mask, preferred_element_type=jnp.float32)

    @pl.when(i == pl.num_programs(1) - 1)
    def _():
        contrib_ref[...] = _finalize(acc_ref[...], risk_j_ref[...], e_ref[...])


def negative_log_likelihood(risk_pred, y, e, *, block_i=2048, block_j=512):
    """Cox partial negative log-likelihood, matching the torch module's forward."""
    n = risk_pred.shape[0]
    risk = jnp.asarray(risk_pred, jnp.float32).reshape(-1)
    yv = jnp.asarray(y, jnp.float32).reshape(-1)
    ev = jnp.asarray(e, jnp.float32).reshape(-1)

    # Shift both the exp-weights (i side) and the j-side risk by max(risk): the shift
    # cancels exactly in (risk_j - log_loss) and exp() can no longer overflow in f32.
    # exp + bf16 hi/lo split are hoisted out of the kernel (done once, O(N)).
    m = jnp.max(risk)
    risk_s = risk - m
    expw = jnp.exp(risk_s)                                   # in (0, 1]
    hi = expw.astype(jnp.bfloat16)
    lo = (expw - hi.astype(jnp.float32)).astype(jnp.bfloat16)  # residual -> ~f32 accuracy

    n_128 = _round_up(n, 128)
    if n_128 <= block_i:
        # Single i pass: no reduction grid axis, no accumulator, no pl.when phases.
        if n_128 <= 128:
            blk_j = 128
        else:
            # keep >= 2 "parallel" j tiles when possible (v7x dual-TC sharding)
            blk_j = min(block_j, _round_up(n_128 // 2, 128))
        n_pad = _round_up(n_128, blk_j)
        blk_i = n_pad
        tiled = False
    else:
        blk_i = block_i
        blk_j = min(block_j, blk_i)
        lcm = blk_i * blk_j // math.gcd(blk_i, blk_j)
        n_pad = _round_up(n_128, lcm)
        tiled = True

    pad = n_pad - n
    y_row = jnp.pad(yv, (0, pad), constant_values=_PAD_TIME).reshape(1, n_pad)
    y_col = y_row.reshape(n_pad, 1)
    risk_row = jnp.pad(risk_s, (0, pad)).reshape(1, n_pad)   # pad = 0, e pad = 0 -> no effect
    e_row = jnp.pad(ev, (0, pad)).reshape(1, n_pad)

    zeros_b = jnp.zeros((n_pad,), jnp.bfloat16)
    lhs = jnp.stack([
        jnp.pad(hi, (0, pad)),                                # numer, hi part
        jnp.pad(lo, (0, pad)),                                # numer, lo residual
        jnp.pad(jnp.ones((n,), jnp.bfloat16), (0, pad)),      # denom (risk-set count)
        zeros_b, zeros_b, zeros_b, zeros_b, zeros_b,
    ], axis=0)                                                # (8, n_pad) bf16

    n_blk_j = n_pad // blk_j
    # Mask temp is <= 2048*512*2B = 2 MiB; 48 MiB scoped limit is safe on v5e/v6e/v7x.
    cparams = dict(vmem_limit_bytes=48 * 1024 * 1024)

    if not tiled:
        contrib = pl.pallas_call(
            _nll_kernel_single,
            out_shape=jax.ShapeDtypeStruct((1, n_pad), jnp.float32),
            grid_spec=pltpu.PrefetchScalarGridSpec(
                num_scalar_prefetch=0,
                grid=(n_blk_j,),
                in_specs=[
                    pl.BlockSpec((n_pad, 1), lambda j: (0, 0)),   # y column (full i range)
                    pl.BlockSpec((1, blk_j), lambda j: (0, j)),   # y row (j tile)
                    pl.BlockSpec((8, n_pad), lambda j: (0, 0)),   # bf16 lhs (full i range)
                    pl.BlockSpec((1, blk_j), lambda j: (0, j)),   # shifted risk (j tile)
                    pl.BlockSpec((1, blk_j), lambda j: (0, j)),   # event indicator (j tile)
                ],
                out_specs=pl.BlockSpec((1, blk_j), lambda j: (0, j)),
            ),
            compiler_params=pltpu.CompilerParams(
                dimension_semantics=("parallel",), **cparams),
        )(y_col, y_row, lhs, risk_row, e_row)
    else:
        n_blk_i = n_pad // blk_i
        contrib = pl.pallas_call(
            _nll_kernel_tiled,
            out_shape=jax.ShapeDtypeStruct((1, n_pad), jnp.float32),
            grid_spec=pltpu.PrefetchScalarGridSpec(
                num_scalar_prefetch=0,
                grid=(n_blk_j, n_blk_i),          # j parallel, i (reduction) last
                in_specs=[
                    pl.BlockSpec((blk_i, 1), lambda j, i: (i, 0)),
                    pl.BlockSpec((1, blk_j), lambda j, i: (0, j)),
                    pl.BlockSpec((8, blk_i), lambda j, i: (0, i)),
                    pl.BlockSpec((1, blk_j), lambda j, i: (0, j)),
                    pl.BlockSpec((1, blk_j), lambda j, i: (0, j)),
                ],
                out_specs=pl.BlockSpec((1, blk_j), lambda j, i: (0, j)),
                scratch_shapes=[pltpu.VMEM((8, blk_j), jnp.float32)],
            ),
            compiler_params=pltpu.CompilerParams(
                dimension_semantics=("parallel", "arbitrary"), **cparams),
        )(y_col, y_row, lhs, risk_row, e_row)

    # Trivial O(N) scalar epilogue (padded entries contribute exactly 0).
    # NOTE: sum(e) == 0 yields nan, exactly like the torch reference.
    return -(jnp.sum(contrib) / jnp.sum(ev))


def _reference(risk_pred, y, e):
    """Pure-JAX transcription of the torch forward, for verification."""
    mask = jnp.where((y.T - y) > 0, 0.0, 1.0)                       # (N, N)
    log_loss = jnp.exp(risk_pred) * mask                            # (N, N)
    log_loss = jnp.sum(log_loss, axis=0) / jnp.sum(mask, axis=0)    # (N,)
    log_loss = jnp.log(log_loss).reshape(-1, 1)                     # (N, 1)
    return -jnp.sum((risk_pred - log_loss) * e) / jnp.sum(e)


if __name__ == "__main__":
    key = jax.random.PRNGKey(0)
    keys = jax.random.split(key, 3)

    def make_case(k, n):
        k1, k2, k3 = jax.random.split(k, 3)
        risk_pred = jax.random.normal(k1, (n, 1), dtype=jnp.float32)      # risk scores
        y = jax.random.uniform(k2, (n, 1), dtype=jnp.float32) * 100.0     # survival times
        e = (jax.random.uniform(k3, (n, 1)) < 0.6).astype(jnp.float32)    # event indicators
        e = e.at[0, 0].set(1.0)   # guarantee at least one event so sum(e) > 0
        return risk_pred, y, e

    # n=8           -> trivial single-tile, single-pass kernel
    # n=300 default -> single i pass, 2 parallel j tiles (+ padding)
    # n=300 tiny    -> forces the tiled/accumulating kernel (3x3 grid) for coverage
    cases = [
        (keys[0], 8, {}),
        (keys[1], 300, {}),
        (keys[2], 300, dict(block_i=128, block_j=128)),
    ]
    for k, n, kw in cases:
        risk_pred, y, e = make_case(k, n)
        loss = jax.block_until_ready(negative_log_likelihood(risk_pred, y, e, **kw))
        ref = _reference(risk_pred, y, e)
        assert jnp.allclose(loss, ref, rtol=1e-4, atol=1e-5), (n, kw, loss, ref)

    print("KERNEL_OK")
</pallas_src>

<mosaic_0001>
module attributes {stable_mosaic.version = 11 : i64} {
  func.func @_nll_kernel_single(%arg0: i32, %arg1: memref<128x1xf32, #tpu.memory_space<vmem>>, %arg2: memref<1x128xf32, #tpu.memory_space<vmem>>, %arg3: memref<8x128xbf16, #tpu.memory_space<vmem>>, %arg4: memref<1x128xf32, #tpu.memory_space<vmem>>, %arg5: memref<1x128xf32, #tpu.memory_space<vmem>>, %arg6: memref<1x128xf32, #tpu.memory_space<vmem>>) attributes {dimension_semantics = [#tpu.dimension_semantics<parallel>], iteration_bounds = array<i64: 1>, scalar_prefetch = 0 : i64, scratch_operands = 0 : i64, tpu.core_type = #tpu.core_type<tc>, window_params = [{pipeline_mode = #tpu.pipeline_mode<synchronous>, transform_indices = @transform_0, window_bounds = array<i64: 128, 1>}, {transform_indices = @transform_1, window_bounds = array<i64: 1, 128>}, {pipeline_mode = #tpu.pipeline_mode<synchronous>, transform_indices = @transform_2, window_bounds = array<i64: 8, 128>}, {transform_indices = @transform_3, window_bounds = array<i64: 1, 128>}, {transform_indices = @transform_4, window_bounds = array<i64: 1, 128>}, {transform_indices = @transform_5, window_bounds = array<i64: 1, 128>}]} {
    %c0 = arith.constant 0 : index
    %c0_0 = arith.constant 0 : index
    %0 = vector.load %arg2[%c0, %c0_0] : memref<1x128xf32, #tpu.memory_space<vmem>>, vector<1x128xf32>
    %c0_1 = arith.constant 0 : index
    %c0_2 = arith.constant 0 : index
    %1 = vector.load %arg1[%c0_1, %c0_2] : memref<128x1xf32, #tpu.memory_space<vmem>>, vector<128x1xf32>
    %2 = vector.broadcast %0 : vector<1x128xf32> to vector<128x128xf32>
    %3 = vector.broadcast %1 : vector<128x1xf32> to vector<128x128xf32>
    %4 = arith.cmpf ole, %2, %3 : vector<128x128xf32>
    %5 = arith.extui %4 : vector<128x128xi1> to vector<128x128xi32>
    %6 = arith.sitofp %5 : vector<128x128xi32> to vector<128x128xf32>
    %7 = arith.truncf %6 : vector<128x128xf32> to vector<128x128xbf16>
    %c0_3 = arith.constant 0 : index
    %c0_4 = arith.constant 0 : index
    %8 = vector.load %arg3[%c0_3, %c0_4] : memref<8x128xbf16, #tpu.memory_space<vmem>>, vector<8x128xbf16>
    %cst = arith.constant dense<0.000000e+00> : vector<8x128xf32>
    %9 = tpu.matmul %8, %7, %cst {dimension_numbers = #tpu.dot_dimension_numbers<[1], [0], [0], [1], [0, 0, 1, 1], [], []>} : vector<8x128xbf16>, vector<128x128xbf16>, vector<8x128xf32> -> vector<8x128xf32>
    %c0_5 = arith.constant 0 : index
    %c0_6 = arith.constant 0 : index
    %10 = vector.load %arg4[%c0_5, %c0_6] : memref<1x128xf32, #tpu.memory_space<vmem>>, vector<1x128xf32>
    %c0_7 = arith.constant 0 : index
    %c0_8 = arith.constant 0 : index
    %11 = vector.load %arg5[%c0_7, %c0_8] : memref<1x128xf32, #tpu.memory_space<vmem>>, vector<1x128xf32>
    %12 = vector.extract_strided_slice %9 {offsets = [0, 0], sizes = [1, 128], strides = [1, 1]} : vector<8x128xf32> to vector<1x128xf32>
    %13 = vector.extract_strided_slice %9 {offsets = [1, 0], sizes = [1, 128], strides = [1, 1]} : vector<8x128xf32> to vector<1x128xf32>
    %14 = arith.addf %12, %13 : vector<1x128xf32>
    %15 = vector.extract_strided_slice %9 {offsets = [2, 0], sizes = [1, 128], strides = [1, 1]} : vector<8x128xf32> to vector<1x128xf32>
    %16 = math.log %14 : vector<1x128xf32>
    %17 = math.log %15 : vector<1x128xf32>
    %18 = arith.subf %16, %17 : vector<1x128xf32>
    %19 = arith.subf %10, %18 : vector<1x128xf32>
    %20 = arith.mulf %19, %11 : vector<1x128xf32>
    %c0_9 = arith.constant 0 : index
    %c0_10 = arith.constant 0 : index
    %21 = vector.load %arg6[%c0_9, %c0_10] : memref<1x128xf32, #tpu.memory_space<vmem>>, vector<1x128xf32>
    tpu.vector_store %arg6[%c0_9, %c0_10], %20 {strides = array<i32>} : memref<1x128xf32, #tpu.memory_space<vmem>>, vector<1x128xf32>,
    return
  }
  func.func @transform_0(%arg0: i32) -> (i32, i32) {
    %c0_i32 = arith.constant 0 : i32
    %c0_i32_0 = arith.constant 0 : i32
    %c0_i32_1 = arith.constant 0 : i32
    return %c0_i32, %c0_i32_0 : i32, i32
  }
  func.func @transform_1(%arg0: i32) -> (i32, i32) {
    %c0_i32 = arith.constant 0 : i32
    %c0_i32_0 = arith.constant 0 : i32
    return %c0_i32, %arg0 : i32, i32
  }
  func.func @transform_2(%arg0: i32) -> (i32, i32) {
    %c0_i32 = arith.constant 0 : i32
    %c0_i32_0 = arith.constant 0 : i32
    %c0_i32_1 = arith.constant 0 : i32
    return %c0_i32, %c0_i32_0 : i32, i32
  }
  func.func @transform_3(%arg0: i32) -> (i32, i32) {
    %c0_i32 = arith.constant 0 : i32
    %c0_i32_0 = arith.constant 0 : i32
    return %c0_i32, %arg0 : i32, i32
  }
  func.func @transform_4(%arg0: i32) -> (i32, i32) {
    %c0_i32 = arith.constant 0 : i32
    %c0_i32_0 = arith.constant 0 : i32
    return %c0_i32, %arg0 : i32, i32
  }
  func.func @transform_5(%arg0: i32) -> (i32, i32) {
    %c0_i32 = arith.constant 0 : i32
    %c0_i32_0 = arith.constant 0 : i32
    return %c0_i32, %arg0 : i32, i32
  }
}

</mosaic_0001>

<llo_original>
// kernel: tpu_custom_call.1
$region0: #{tpu_custom_call.1}
  #allocation0 [shape = 'u32[]', space=smem, size = 0x4, offset = 0x4, fixed_abs, tag = 'smem constant byte address 0x4 - core index']
  #allocation1 [shape = 'u32[72,128]{1,0:T(1,128)}', space=vmem, size = 0x9000, scoped, tag = 'internal scratch']
  %s0 = inlined_call_operand.vmem [shape: f32[128,1], index: 0, kind: input, shape index: {}]
  %s1 = inlined_call_operand.vmem [shape: f32[1,128], index: 1, kind: input, shape index: {}]
  %s2 = inlined_call_operand.vmem [shape: bf16[8,128], index: 2, kind: input, shape index: {}]
  %s3 = inlined_call_operand.vmem [shape: f32[1,128], index: 3, kind: input, shape index: {}]
  %s4 = inlined_call_operand.vmem [shape: f32[1,128], index: 4, kind: input, shape index: {}]
  %s5 = inlined_call_operand.hbm [shape: f32[1,128], index: 5, kind: output, shape index: {}]
  %s6 = sld [smem:[#allocation0]]
  $region30: #{tpu_custom_call.1} parent=0
    _
  %s8 = ssub.s32 1, %s6
  %s9 = scalar_select 0, %s8, %s6
  $region1: #{tpu_custom_call.1} parent=0
    #allocation2 [shape = 'u8[512]{0}', space=vmem, size = 0x400, scoped, tag = 'output window, operand 0, single buffered']
    #allocation3 [shape = 's32[1]{0}', space=sflag, size = 0x4, scoped, tag = 'scoped memory for tpu_custom_call.1']
    %10 = vsyncpa [#allocation3], 0
    // Predicated region
    $region2: #{tpu_custom_call.1} parent=1 // pred_check
      _
    $region3: #{tpu_custom_call.1} parent=1 // pred_check_branch
      %12 = sbr.rel (0) target = $region5
    $region4: #{tpu_custom_call.1} parent=1 // pred_region
      _
    $region5: #{tpu_custom_call.1} parent=1 // pred_fallthru
      _
    // Predicated region
    $region6: #{tpu_custom_call.1} parent=1 // pred_check
      _
    $region7: #{tpu_custom_call.1} parent=1 // pred_check_branch
      %14 = sbr.rel (0) target = $region9
    $region8: #{tpu_custom_call.1} parent=1 // pred_region
      _
    $region9: #{tpu_custom_call.1} parent=1 // pred_fallthru
      _
    // Predicated region
    $region10: #{tpu_custom_call.1} parent=1 // pred_check
      _
    $region11: #{tpu_custom_call.1} parent=1 // pred_check_branch
      %16 = sbr.rel (0) target = $region13
    $region12: #{tpu_custom_call.1} parent=1 // pred_region
      _
    $region13: #{tpu_custom_call.1} parent=1 // pred_fallthru
      _
    // Predicated region
    $region14: #{tpu_custom_call.1} parent=1 // pred_check
      _
    $region15: #{tpu_custom_call.1} parent=1 // pred_check_branch
      %18 = sbr.rel (0) target = $region17
    $region16: #{tpu_custom_call.1} parent=1 // pred_region
      _
    $region17: #{tpu_custom_call.1} parent=1 // pred_fallthru
      _
    // Predicated region
    $region18: #{tpu_custom_call.1} parent=1 // pred_check
      _
    $region19: #{tpu_custom_call.1} parent=1 // pred_check_branch
      %20 = sbr.rel (0) target = $region21
    $region20: #{tpu_custom_call.1} parent=1 // pred_region
      _
    $region21: #{tpu_custom_call.1} parent=1 // pred_fallthru
      _
    %v21 = vld [vmem:[%s1] sm:$0x1]
    %v22 = vld [vmem:[%s0] sm:$0xff]
    %v23 = vld [vmem:[%s0 + $0x8] sm:$0xff]
    %v24 = vld [vmem:[%s0 + $0x10] sm:$0xff]
    %v25 = vld [vmem:[%s0 + $0x18] sm:$0xff]
    %v26 = vld [vmem:[%s0 + $0x20] sm:$0xff]
    %v27 = vld [vmem:[%s0 + $0x28] sm:$0xff]
    %v28 = vld [vmem:[%s0 + $0x30] sm:$0xff]
    %v29 = vld [vmem:[%s0 + $0x38] sm:$0xff]
    %v30 = vld [vmem:[%s0 + $0x40] sm:$0xff]
    %v31 = vld [vmem:[%s0 + $0x48] sm:$0xff]
    %v32 = vld [vmem:[%s0 + $0x50] sm:$0xff]
    %v33 = vld [vmem:[%s0 + $0x58] sm:$0xff]
    %v34 = vld [vmem:[%s0 + $0x60] sm:$0xff]
    %v35 = vld [vmem:[%s0 + $0x68] sm:$0xff]
    %v36 = vld [vmem:[%s0 + $0x70] sm:$0xff]
    %v37 = vld [vmem:[%s0 + $0x78] sm:$0xff]
    %v39 = vperm.slane %v21, 0
    %42 = vset.pattern.permute.xlu0 0
    %43 = vperm.xlu0 %42, %v22
    %v44 = vpop.permute.xlu0 %43
    %47 = vset.pattern.permute.xlu0 0
    %48 = vperm.xlu0 %47, %v23
    %v49 = vpop.permute.xlu0 %48
    %52 = vset.pattern.permute.xlu0 0
    %53 = vperm.xlu0 %52, %v24
    %v54 = vpop.permute.xlu0 %53
    %57 = vset.pattern.permute.xlu0 0
    %58 = vperm.xlu0 %57, %v25
    %v59 = vpop.permute.xlu0 %58
    %62 = vset.pattern.permute.xlu0 0
    %63 = vperm.xlu0 %62, %v26
    %v64 = vpop.permute.xlu0 %63
    %67 = vset.pattern.permute.xlu0 0
    %68 = vperm.xlu0 %67, %v27
    %v69 = vpop.permute.xlu0 %68
    %72 = vset.pattern.permute.xlu0 0
    %73 = vperm.xlu0 %72, %v28
    %v74 = vpop.permute.xlu0 %73
    %77 = vset.pattern.permute.xlu0 0
    %78 = vperm.xlu0 %77, %v29
    %v79 = vpop.permute.xlu0 %78
    %82 = vset.pattern.permute.xlu0 0
    %83 = vperm.xlu0 %82, %v30
    %v84 = vpop.permute.xlu0 %83
    %87 = vset.pattern.permute.xlu0 0
    %88 = vperm.xlu0 %87, %v31
    %v89 = vpop.permute.xlu0 %88
    %92 = vset.pattern.permute.xlu0 0
    %93 = vperm.xlu0 %92, %v32
    %v94 = vpop.permute.xlu0 %93
    %97 = vset.pattern.permute.xlu0 0
    %98 = vperm.xlu0 %97, %v33
    %v99 = vpop.permute.xlu0 %98
    %102 = vset.pattern.permute.xlu0 0
    %103 = vperm.xlu0 %102, %v34
    %v104 = vpop.permute.xlu0 %103
    %107 = vset.pattern.permute.xlu0 0
    %108 = vperm.xlu0 %107, %v35
    %v109 = vpop.permute.xlu0 %108
    %112 = vset.pattern.permute.xlu0 0
    %113 = vperm.xlu0 %112, %v36
    %v114 = vpop.permute.xlu0 %113
    %117 = vset.pattern.permute.xlu0 0
    %118 = vperm.xlu0 %117, %v37
    %v119 = vpop.permute.xlu0 %118
    %vm121 = vcmp.le.f32.partialorder %v39, %v44
    %vm122 = vcmp.le.f32.partialorder %v39, %v49
    %vm123 = vcmp.le.f32.partialorder %v39, %v54
    %vm124 = vcmp.le.f32.partialorder %v39, %v59
    %vm125 = vcmp.le.f32.partialorder %v39, %v64
    %vm126 = vcmp.le.f32.partialorder %v39, %v69
    %vm127 = vcmp.le.f32.partialorder %v39, %v74
    %vm128 = vcmp.le.f32.partialorder %v39, %v79
    %vm129 = vcmp.le.f32.partialorder %v39, %v84
    %vm130 = vcmp.le.f32.partialorder %v39, %v89
    %vm131 = vcmp.le.f32.partialorder %v39, %v94
    %vm132 = vcmp.le.f32.partialorder %v39, %v99
    %vm133 = vcmp.le.f32.partialorder %v39, %v104
    %vm134 = vcmp.le.f32.partialorder %v39, %v109
    %vm135 = vcmp.le.f32.partialorder %v39, %v114
    %vm136 = vcmp.le.f32.partialorder %v39, %v119
    %v137 = vsel %vm121, 1, 0
    %v138 = vsel %vm122, 1, 0
    %v139 = vsel %vm123, 1, 0
    %v140 = vsel %vm124, 1, 0
    %v141 = vsel %vm125, 1, 0
    %v142 = vsel %vm126, 1, 0
    %v143 = vsel %vm127, 1, 0
    %v144 = vsel %vm128, 1, 0
    %v145 = vsel %vm129, 1, 0
    %v146 = vsel %vm130, 1, 0
    %v147 = vsel %vm131, 1, 0
    %v148 = vsel %vm132, 1, 0
    %v149 = vsel %vm133, 1, 0
    %v150 = vsel %vm134, 1, 0
    %v151 = vsel %vm135, 1, 0
    %v152 = vsel %vm136, 1, 0
    %v153 = vcvt.s32.f32 %v137
    %v154 = vcvt.s32.f32 %v138
    %v155 = vcvt.s32.f32 %v139
    %v156 = vcvt.s32.f32 %v140
    %v157 = vcvt.s32.f32 %v141
    %v158 = vcvt.s32.f32 %v142
    %v159 = vcvt.s32.f32 %v143
    %v160 = vcvt.s32.f32 %v144
    %v161 = vcvt.s32.f32 %v145
    %v162 = vcvt.s32.f32 %v146
    %v163 = vcvt.s32.f32 %v147
    %v164 = vcvt.s32.f32 %v148
    %v165 = vcvt.s32.f32 %v149
    %v166 = vcvt.s32.f32 %v150
    %v167 = vcvt.s32.f32 %v151
    %v168 = vcvt.s32.f32 %v152
    %v169 = vpack.c.bf16 %v154, %v153
    %v170 = vpack.c.bf16 %v156, %v155
    %v171 = vpack.c.bf16 %v158, %v157
    %v172 = vpack.c.bf16 %v160, %v159
    %v173 = vpack.c.bf16 %v162, %v161
    %v174 = vpack.c.bf16 %v164, %v163
    %v175 = vpack.c.bf16 %v166, %v165
    %v176 = vpack.c.bf16 %v168, %v167
    %v177 = vld [vmem:[%s2] sm:$0xf]
    %178 = vmatpush.bf16.msra.mxu0 %v176
    %179 = vmatpush.bf16.msra.mxu0 %v175
    %180 = vmatpush.bf16.msra.mxu0 %v174
    %181 = vmatpush.bf16.msra.mxu0 %v173
    %182 = vmatpush.bf16.msra.mxu0 %v172
    %183 = vmatpush.bf16.msra.mxu0 %v171
    %184 = vmatpush.bf16.msra.mxu0 %v170
    %185 = vmatpush.bf16.msra.mxu0 %v169
    %186 = vmatmul.bf16.gmra.mxu0 %v177
    %v187 = vpop.f32.mrf.mxu0
    %v188 = vadd.f32 0.0, %v187
    %v189 = vpop.f32.mrf.mxu0
    %190 = vdwg.mxu0
    %v191 = vld [vmem:[%s3] sm:$0x1]
    %v192 = vld [vmem:[%s4] sm:$0x1]
    %v194 = vrot.slane %v188, 1
    %v196 = vadd.f32 %v188, %v194
    %v197 = vlog2.pop %v196
    %v198 = vmul.f32 %v197, 0.6931472
    %v199 = vlog2.pop %v188
    %v200 = vmul.f32 %v199, 0.6931472
    %v202 = vrot.slane %v200, 2
    %v204 = vsub.f32 %v198, %v202
    %v205 = vsub.f32 %v191, %v204
    %v206 = vmul.f32 %v205, %v192
    %207 = vst [vmem:[#allocation2] sm:$0x1] %v206
    // Predicated region
    $region22: #{tpu_custom_call.1} parent=1 // pred_check
      _
    $region23: #{tpu_custom_call.1} parent=1 // pred_check_branch
      %209 = sbr.rel (0) target = $region25
    $region24: #{tpu_custom_call.1} parent=1 // pred_region
      %211 = vsyncadd [#allocation3], 0
      %s213 = sshll.u32 [#allocation2], 4
      %s214 = int_to_ptr.vmem [resolvable:$true] %s213
      %s215 = sshll.u32 %s5, 4
      %s216 = int_to_ptr.hbm [resolvable:$true] %s215
      %218 = dma.vmem_to_hbm [thread:$0]  %s214, 16, %s216, [#allocation3]
    $region25: #{tpu_custom_call.1} parent=1 // pred_fallthru
      _
    // Predicated region
    $region26: #{tpu_custom_call.1} parent=1 // pred_check
      _
    $region27: #{tpu_custom_call.1} parent=1 // pred_check_branch
      %220 = sbr.rel (0) target = $region29
    $region28: #{tpu_custom_call.1} parent=1 // pred_region
      %222 = dma.done [#allocation3], 16
    $region29: #{tpu_custom_call.1} parent=1 // pred_fallthru
      _
    %223 = vsyncpa [#allocation3], 1

</llo_original>
